<compile_context>
chip_gen: v7x
topology: tpu7x:2x2x1
jax: 0.10.0
libtpu: 0.0.40
codegen_flags: <defaults>
</compile_context>

<pallas_src>
import jax
import jax.numpy as jnp
import numpy as np
from jax.experimental import pallas as pl
from jax.experimental.pallas import tpu as pltpu


# --------------------------------------------------------------------------
# Kernel: 3 matmuls + ReLU + sigmoid, everything already resident in VMEM.
# --------------------------------------------------------------------------
def _mm_classifier_kernel(txt_ref, img_ref,
                          wa_ref, wi_ref, bf_ref,
                          w2_ref, b2_ref,
                          out_ref):
    h = (jnp.dot(txt_ref[...], wa_ref[...], preferred_element_type=jnp.float32)
         + jnp.dot(img_ref[...], wi_ref[...], preferred_element_type=jnp.float32)
         + bf_ref[...])
    h = jnp.maximum(h, 0.0)                                   # ReLU (dropout = identity, eval)
    logits = jnp.dot(h, w2_ref[...], preferred_element_type=jnp.float32) + b2_ref[...]
    out_ref[...] = jax.nn.sigmoid(logits)                     # exp + reciprocal -> EUP


# --------------------------------------------------------------------------
# One-time weight preparation (algebraic fusion + pre-transposition).
# Run ONCE when params are loaded, NOT per forward call.
# --------------------------------------------------------------------------
def prepare_params(params, Dt, Di):
    E = Dt
    in_w = params["in_proj_weight"]          # (3E, E)  PyTorch MHA packed qkv
    in_b = params["in_proj_bias"]            # (3E,)

    wv = in_w[2 * E:].T                      # (E, E):  x @ wv == x @ Wv^T
    bv = in_b[2 * E:]                        # (E,)
    wo = params["out_proj_w"].T              # (E, E)
    bo = params["out_proj_b"]                # (E,)

    w1 = params["fc1_w"].T                   # (Dt+Di, H)
    w1t, w1i = w1[:Dt], w1[Dt:]              # text / image halves of fc1
    b1 = params["fc1_b"]                     # (H,)

    # seq-len-1 attention == value path:  attended = txt @ wv @ wo + (bv @ wo + bo)
    w_vo = wv @ wo                           # (E, E)
    b_vo = bv @ wo + bo                      # (E,)

    # fold into the text half of fc1
    w_a = w_vo @ w1t                         # (Dt, H)
    b_f = b_vo @ w1t + b1                    # (H,)

    return {
        "w_a": jnp.asarray(w_a, jnp.float32),
        "w_i": jnp.asarray(w1i, jnp.float32),
        "b_f": jnp.asarray(b_f, jnp.float32)[None, :],
        "w2":  jnp.asarray(params["fc2_w"].T, jnp.float32),   # (H, O)
        "b2":  jnp.asarray(params["fc2_b"], jnp.float32)[None, :],
    }


# --------------------------------------------------------------------------
# Forward wrapper: single pallas_call, no grid, whole arrays in VMEM.
# (At serving batch sizes one would tile over B with a 'parallel' grid axis;
#  at B~O(100) the whole problem still fits VMEM comfortably.)
# --------------------------------------------------------------------------
def multimodal_classifier_forward(text_emb, image_emb, caption_emb, prepped):
    # Attention over a single key position: softmax == 1.0 for every head, so
    # the output does not depend on the caption/query (exact).
    del caption_emb
    B = text_emb.shape[0]
    O = prepped["w2"].shape[1]

    inputs = [text_emb, image_emb,
              prepped["w_a"], prepped["w_i"], prepped["b_f"],
              prepped["w2"], prepped["b2"]]

    vmem_spec = lambda: pl.BlockSpec(memory_space=pltpu.MemorySpace.VMEM)

    return pl.pallas_call(
        _mm_classifier_kernel,
        out_shape=jax.ShapeDtypeStruct((B, O), jnp.float32),
        in_specs=[vmem_spec() for _ in inputs],
        out_specs=vmem_spec(),
    )(*inputs)


# --------------------------------------------------------------------------
# Param init mimicking the PyTorch module's initializers.
# --------------------------------------------------------------------------
def init_params(key, Dt, Di, H, O):
    E = Dt
    ks = jax.random.split(key, 6)

    def unif(k, shape, scale):
        return jax.random.uniform(k, shape, jnp.float32, -scale, scale)

    return {
        "in_proj_weight": unif(ks[0], (3 * E, E), float(np.sqrt(6.0 / (4.0 * E)))),
        "in_proj_bias":   jnp.zeros((3 * E,), jnp.float32),
        "out_proj_w":     unif(ks[1], (E, E), float(1.0 / np.sqrt(E))),
        "out_proj_b":     jnp.zeros((E,), jnp.float32),
        "fc1_w": unif(ks[2], (H, Dt + Di), float(1.0 / np.sqrt(Dt + Di))),
        "fc1_b": unif(ks[3], (H,),         float(1.0 / np.sqrt(Dt + Di))),
        "fc2_w": unif(ks[4], (O, H),       float(1.0 / np.sqrt(H))),
        "fc2_b": unif(ks[5], (O,),         float(1.0 / np.sqrt(H))),
    }


def reference_forward(text, image, cap, params, num_heads=3):
    """Pure-JAX reference replicating the PyTorch forward exactly (no fusion)."""
    B, E = text.shape
    hd = E // num_heads
    in_w, in_b = params["in_proj_weight"], params["in_proj_bias"]
    q = cap @ in_w[:E].T + in_b[:E]
    k = text @ in_w[E:2 * E].T + in_b[E:2 * E]
    v = text @ in_w[2 * E:].T + in_b[2 * E:]
    qh = q.reshape(B, num_heads, hd)
    kh = k.reshape(B, num_heads, hd)
    vh = v.reshape(B, num_heads, hd)
    scores = (qh * kh).sum(-1, keepdims=True) / jnp.sqrt(hd)   # (B, heads, 1) single key
    w = jax.nn.softmax(scores, axis=-1)                        # all ones
    attn_out = (w * vh).reshape(B, E)
    attended = attn_out @ params["out_proj_w"].T + params["out_proj_b"]
    combined = jnp.concatenate([attended, image], axis=1)
    h = jnp.maximum(combined @ params["fc1_w"].T + params["fc1_b"], 0.0)
    return jax.nn.sigmoid(h @ params["fc2_w"].T + params["fc2_b"])


if __name__ == "__main__":
    # Shapes consistent with the module:
    #   text / caption embeddings: (B, 96)  (embed_dim divisible by num_heads=3)
    #   image embedding:           (B, 64)
    #   hidden_size=32, output_size=4
    B, Dt, Di, H, O = 2, 96, 64, 32, 4

    key = jax.random.PRNGKey(0)
    k_txt, k_img, k_cap, k_par = jax.random.split(key, 4)
    text_emb = jax.random.normal(k_txt, (B, Dt), jnp.float32)
    image_emb = jax.random.normal(k_img, (B, Di), jnp.float32)
    caption_emb = jax.random.normal(k_cap, (B, Dt), jnp.float32)
    params = init_params(k_par, Dt, Di, H, O)

    # One-time weight fusion (done at param-load time, outside the forward path).
    prepped = jax.tree_util.tree_map(jax.block_until_ready,
                                     prepare_params(params, Dt, Di))

    out = multimodal_classifier_forward(text_emb, image_emb, caption_emb, prepped)
    out = jax.block_until_ready(out)

    ref = reference_forward(text_emb, image_emb, caption_emb, params)
    np.testing.assert_allclose(np.asarray(out), np.asarray(ref), rtol=1e-5, atol=1e-5)

    print("KERNEL_OK")
</pallas_src>

<mosaic_0001>
module attributes {stable_mosaic.version = 11 : i64} {
  func.func @_mm_classifier_kernel(%arg0: memref<2x96xf32, #tpu.memory_space<vmem>>, %arg1: memref<2x64xf32, #tpu.memory_space<vmem>>, %arg2: memref<96x32xf32, #tpu.memory_space<vmem>>, %arg3: memref<64x32xf32, #tpu.memory_space<vmem>>, %arg4: memref<1x32xf32, #tpu.memory_space<vmem>>, %arg5: memref<32x4xf32, #tpu.memory_space<vmem>>, %arg6: memref<1x4xf32, #tpu.memory_space<vmem>>, %arg7: memref<2x4xf32, #tpu.memory_space<vmem>>) attributes {dimension_semantics = [], scalar_prefetch = 0 : i64, scratch_operands = 0 : i64, tpu.core_type = #tpu.core_type<tc>} {
    %c0 = arith.constant 0 : index
    %c0_0 = arith.constant 0 : index
    %0 = vector.load %arg0[%c0, %c0_0] : memref<2x96xf32, #tpu.memory_space<vmem>>, vector<2x96xf32>
    %c0_1 = arith.constant 0 : index
    %c0_2 = arith.constant 0 : index
    %1 = vector.load %arg2[%c0_1, %c0_2] : memref<96x32xf32, #tpu.memory_space<vmem>>, vector<96x32xf32>
    %cst = arith.constant dense<0.000000e+00> : vector<2x32xf32>
    %2 = tpu.matmul %0, %1, %cst {dimension_numbers = #tpu.dot_dimension_numbers<[1], [0], [0], [1], [0, 0, 1, 1], [], []>} : vector<2x96xf32>, vector<96x32xf32>, vector<2x32xf32> -> vector<2x32xf32>
    %c0_3 = arith.constant 0 : index
    %c0_4 = arith.constant 0 : index
    %3 = vector.load %arg1[%c0_3, %c0_4] : memref<2x64xf32, #tpu.memory_space<vmem>>, vector<2x64xf32>
    %c0_5 = arith.constant 0 : index
    %c0_6 = arith.constant 0 : index
    %4 = vector.load %arg3[%c0_5, %c0_6] : memref<64x32xf32, #tpu.memory_space<vmem>>, vector<64x32xf32>
    %cst_7 = arith.constant dense<0.000000e+00> : vector<2x32xf32>
    %5 = tpu.matmul %3, %4, %cst_7 {dimension_numbers = #tpu.dot_dimension_numbers<[1], [0], [0], [1], [0, 0, 1, 1], [], []>} : vector<2x64xf32>, vector<64x32xf32>, vector<2x32xf32> -> vector<2x32xf32>
    %6 = arith.addf %2, %5 : vector<2x32xf32>
    %c0_8 = arith.constant 0 : index
    %c0_9 = arith.constant 0 : index
    %7 = vector.load %arg4[%c0_8, %c0_9] : memref<1x32xf32, #tpu.memory_space<vmem>>, vector<1x32xf32>
    %8 = vector.broadcast %7 : vector<1x32xf32> to vector<2x32xf32>
    %9 = arith.addf %6, %8 : vector<2x32xf32>
    %cst_10 = arith.constant 0.000000e+00 : f32
    %10 = vector.broadcast %cst_10 : f32 to vector<2x32xf32>
    %11 = arith.maximumf %9, %10 : vector<2x32xf32>
    %c0_11 = arith.constant 0 : index
    %c0_12 = arith.constant 0 : index
    %12 = vector.load %arg5[%c0_11, %c0_12] : memref<32x4xf32, #tpu.memory_space<vmem>>, vector<32x4xf32>
    %cst_13 = arith.constant dense<0.000000e+00> : vector<2x4xf32>
    %13 = tpu.matmul %11, %12, %cst_13 {dimension_numbers = #tpu.dot_dimension_numbers<[1], [0], [0], [1], [0, 0, 1, 1], [], []>} : vector<2x32xf32>, vector<32x4xf32>, vector<2x4xf32> -> vector<2x4xf32>
    %c0_14 = arith.constant 0 : index
    %c0_15 = arith.constant 0 : index
    %14 = vector.load %arg6[%c0_14, %c0_15] : memref<1x4xf32, #tpu.memory_space<vmem>>, vector<1x4xf32>
    %15 = vector.broadcast %14 : vector<1x4xf32> to vector<2x4xf32>
    %16 = arith.addf %13, %15 : vector<2x4xf32>
    %17 = arith.negf %16 : vector<2x4xf32>
    %18 = math.exp %17 : vector<2x4xf32>
    %cst_16 = arith.constant 1.000000e+00 : f32
    %19 = vector.broadcast %cst_16 : f32 to vector<2x4xf32>
    %20 = arith.addf %19, %18 : vector<2x4xf32>
    %21 = arith.divf %19, %20 : vector<2x4xf32>
    %c0_17 = arith.constant 0 : index
    %c0_18 = arith.constant 0 : index
    %22 = vector.load %arg7[%c0_17, %c0_18] : memref<2x4xf32, #tpu.memory_space<vmem>>, vector<2x4xf32>
    tpu.vector_store %arg7[%c0_17, %c0_18], %21 {strides = array<i32>} : memref<2x4xf32, #tpu.memory_space<vmem>>, vector<2x4xf32>,
    return
  }
}

</mosaic_0001>

<llo_original>
// kernel: tpu_custom_call.1
$region0: #{tpu_custom_call.1}
  #allocation0 [shape = 'u32[]', space=smem, size = 0x4, offset = 0x4, fixed_abs, tag = 'smem constant byte address 0x4 - core index']
  #allocation1 [shape = 'u32[144,128]{1,0:T(1,128)}', space=vmem, size = 0x12000, scoped, tag = 'internal scratch']
  %s0 = inlined_call_operand.vmem [shape: f32[2,96], index: 0, kind: input, shape index: {}]
  %s1 = inlined_call_operand.vmem [shape: f32[2,64], index: 1, kind: input, shape index: {}]
  %s2 = inlined_call_operand.vmem [shape: f32[96,32], index: 2, kind: input, shape index: {}]
  %s3 = inlined_call_operand.vmem [shape: f32[64,32], index: 3, kind: input, shape index: {}]
  %s4 = inlined_call_operand.vmem [shape: f32[1,32], index: 4, kind: input, shape index: {}]
  %s5 = inlined_call_operand.vmem [shape: f32[32,4], index: 5, kind: input, shape index: {}]
  %s6 = inlined_call_operand.vmem [shape: f32[1,4], index: 6, kind: input, shape index: {}]
  %s7 = inlined_call_operand.hbm [shape: f32[2,4], index: 7, kind: output, shape index: {}]
  %s8 = sld [smem:[#allocation0]]
  $region38: #{tpu_custom_call.1} parent=0
    _
  %s10 = ssub.s32 1, %s8
  %s11 = scalar_select 0, %s10, %s8
  $region1: #{tpu_custom_call.1} parent=0
    #allocation2 [shape = 'u8[1024]{0}', space=vmem, size = 0x400, scoped, tag = 'output window, operand 0, single buffered']
    #allocation3 [shape = 's32[1]{0}', space=sflag, size = 0x4, scoped, tag = 'scoped memory for tpu_custom_call.1']
    %12 = vsyncpa [#allocation3], 0
    // Predicated region
    $region2: #{tpu_custom_call.1} parent=1 // pred_check
      _
    $region3: #{tpu_custom_call.1} parent=1 // pred_check_branch
      %14 = sbr.rel (0) target = $region5
    $region4: #{tpu_custom_call.1} parent=1 // pred_region
      _
    $region5: #{tpu_custom_call.1} parent=1 // pred_fallthru
      _
    // Predicated region
    $region6: #{tpu_custom_call.1} parent=1 // pred_check
      _
    $region7: #{tpu_custom_call.1} parent=1 // pred_check_branch
      %16 = sbr.rel (0) target = $region9
    $region8: #{tpu_custom_call.1} parent=1 // pred_region
      _
    $region9: #{tpu_custom_call.1} parent=1 // pred_fallthru
      _
    // Predicated region
    $region10: #{tpu_custom_call.1} parent=1 // pred_check
      _
    $region11: #{tpu_custom_call.1} parent=1 // pred_check_branch
      %18 = sbr.rel (0) target = $region13
    $region12: #{tpu_custom_call.1} parent=1 // pred_region
      _
    $region13: #{tpu_custom_call.1} parent=1 // pred_fallthru
      _
    // Predicated region
    $region14: #{tpu_custom_call.1} parent=1 // pred_check
      _
    $region15: #{tpu_custom_call.1} parent=1 // pred_check_branch
      %20 = sbr.rel (0) target = $region17
    $region16: #{tpu_custom_call.1} parent=1 // pred_region
      _
    $region17: #{tpu_custom_call.1} parent=1 // pred_fallthru
      _
    // Predicated region
    $region18: #{tpu_custom_call.1} parent=1 // pred_check
      _
    $region19: #{tpu_custom_call.1} parent=1 // pred_check_branch
      %22 = sbr.rel (0) target = $region21
    $region20: #{tpu_custom_call.1} parent=1 // pred_region
      _
    $region21: #{tpu_custom_call.1} parent=1 // pred_fallthru
      _
    // Predicated region
    $region22: #{tpu_custom_call.1} parent=1 // pred_check
      _
    $region23: #{tpu_custom_call.1} parent=1 // pred_check_branch
      %24 = sbr.rel (0) target = $region25
    $region24: #{tpu_custom_call.1} parent=1 // pred_region
      _
    $region25: #{tpu_custom_call.1} parent=1 // pred_fallthru
      _
    // Predicated region
    $region26: #{tpu_custom_call.1} parent=1 // pred_check
      _
    $region27: #{tpu_custom_call.1} parent=1 // pred_check_branch
      %26 = sbr.rel (0) target = $region29
    $region28: #{tpu_custom_call.1} parent=1 // pred_region
      _
    $region29: #{tpu_custom_call.1} parent=1 // pred_fallthru
      _
    %v27 = vld [vmem:[%s0] sm:$0x3]
    %v28 = vld [vmem:[%s2] sm:$0xff]
    %v29 = vld [vmem:[%s2 + $0x8] sm:$0xff]
    %v30 = vld [vmem:[%s2 + $0x10] sm:$0xff]
    %v31 = vld [vmem:[%s2 + $0x18] sm:$0xff]
    %v32 = vld [vmem:[%s2 + $0x20] sm:$0xff]
    %v33 = vld [vmem:[%s2 + $0x28] sm:$0xff]
    %v34 = vld [vmem:[%s2 + $0x30] sm:$0xff]
    %v35 = vld [vmem:[%s2 + $0x38] sm:$0xff]
    %v36 = vld [vmem:[%s2 + $0x40] sm:$0xff]
    %v37 = vld [vmem:[%s2 + $0x48] sm:$0xff]
    %v38 = vld [vmem:[%s2 + $0x50] sm:$0xff]
    %v39 = vld [vmem:[%s2 + $0x58] sm:$0xff]
    %v40 = vld [vmem:[%s1] sm:$0x3]
    %v41 = vld [vmem:[%s3] sm:$0xff]
    %v42 = vld [vmem:[%s3 + $0x8] sm:$0xff]
    %v43 = vld [vmem:[%s3 + $0x10] sm:$0xff]
    %v44 = vld [vmem:[%s3 + $0x18] sm:$0xff]
    %v45 = vld [vmem:[%s3 + $0x20] sm:$0xff]
    %v46 = vld [vmem:[%s3 + $0x28] sm:$0xff]
    %v47 = vld [vmem:[%s3 + $0x30] sm:$0xff]
    %v48 = vld [vmem:[%s3 + $0x38] sm:$0xff]
    %vm49 = vcmask 523264
    %v51 = vsel %vm49, %v40, 0
    %53 = vmatprep.subr.mxu0 0.0
    %54 = vmatpush1.msra.mxu0 %v41
    %55 = vmatprep.subr.mxu0 0.0
    %56 = vmatpush1.msra.mxu0 %v42
    %57 = vmatprep.subr.mxu0 0.0
    %58 = vmatpush1.msra.mxu0 %v43
    %59 = vmatprep.subr.mxu0 0.0
    %60 = vmatpush1.msra.mxu0 %v44
    %61 = vmatprep.subr.mxu0 0.0
    %62 = vmatpush1.msra.mxu0 %v45
    %63 = vmatprep.subr.mxu0 0.0
    %64 = vmatpush1.msra.mxu0 %v46
    %65 = vmatprep.subr.mxu0 0.0
    %66 = vmatpush1.msra.mxu0 %v47
    %67 = vmatprep.subr.mxu0 0.0
    %68 = vmatpush1.msra.mxu0 %v48
    %69 = vmatprep.subr.mxu0 0.0
    %70 = vmatpush1.msra.mxu0 0.0
    %71 = vmatprep.subr.mxu0 0.0
    %72 = vmatpush1.msra.mxu0 0.0
    %73 = vmatprep.subr.mxu0 0.0
    %74 = vmatpush1.msra.mxu0 0.0
    %75 = vmatprep.subr.mxu0 0.0
    %76 = vmatpush1.msra.mxu0 0.0
    %77 = vmatprep.subr.mxu0 0.0
    %78 = vmatpush1.msra.mxu0 0.0
    %79 = vmatprep.subr.mxu0 0.0
    %80 = vmatpush1.msra.mxu0 0.0
    %81 = vmatprep.subr.mxu0 0.0
    %82 = vmatpush1.msra.mxu0 0.0
    %83 = vmatprep.subr.mxu0 0.0
    %84 = vmatpush1.msra.mxu0 0.0
    %85 = vmatprep.subr.mxu0 0.0
    %86 = vmatpush1.msra.mxu0 0.0
    %87 = vmatprep.subr.mxu0 0.0
    %88 = vmatpush1.msra.mxu0 0.0
    %89 = vmatprep.subr.mxu0 0.0
    %90 = vmatpush1.msra.mxu0 0.0
    %91 = vmatprep.subr.mxu0 0.0
    %92 = vmatpush1.msra.mxu0 0.0
    %93 = vmatprep.subr.mxu0 0.0
    %94 = vmatpush1.msra.mxu0 0.0
    %95 = vmatprep.subr.mxu0 0.0
    %96 = vmatpush1.msra.mxu0 0.0
    %97 = vmatprep.subr.mxu0 0.0
    %98 = vmatpush1.msra.mxu0 0.0
    %99 = vmatprep.subr.mxu0 0.0
    %100 = vmatpush1.msra.mxu0 0.0
    %101 = vmatprep.subr.mxu0 0.0
    %102 = vmatpush1.msra.mxu0 0.0
    %103 = vmatprep.subr.mxu0 0.0
    %104 = vmatpush1.msra.mxu0 0.0
    %105 = vmatprep.subr.mxu0 0.0
    %106 = vmatpush1.msra.mxu0 0.0
    %107 = vmatprep.subr.mxu0 0.0
    %108 = vmatpush1.msra.mxu0 0.0
    %109 = vmatprep.subr.mxu0 0.0
    %110 = vmatpush1.msra.mxu0 0.0
    %111 = vmatprep.subr.mxu0 0.0
    %112 = vmatpush1.msra.mxu0 0.0
    %113 = vmatprep.subr.mxu0 0.0
    %114 = vmatpush1.msra.mxu0 0.0
    %115 = vmatprep.subr.mxu0 0.0
    %116 = vmatpush1.msra.mxu0 0.0
    %117 = vmatprep.mubr.f32.mxu0 0.0
    %118 = vmatmul.mubr.f32.gmra.mrb[0].mxu0 %v51
    %v119 = vpop.f32.mrb[0].mxu0
    %v120 = vadd.f32 0.0, %v119
    %v121 = vpop.f32.mrb[0].mxu0
    %122 = vdwg.mxu0
    %vm123 = vcmask 785408
    %v125 = vsel %vm123, %v27, 0
    %127 = vmatprep.subr.mxu0 0.0
    %128 = vmatpush1.msra.mxu0 %v28
    %129 = vmatprep.subr.mxu0 0.0
    %130 = vmatpush1.msra.mxu0 %v29
    %131 = vmatprep.subr.mxu0 0.0
    %132 = vmatpush1.msra.mxu0 %v30
    %133 = vmatprep.subr.mxu0 0.0
    %134 = vmatpush1.msra.mxu0 %v31
    %135 = vmatprep.subr.mxu0 0.0
    %136 = vmatpush1.msra.mxu0 %v32
    %137 = vmatprep.subr.mxu0 0.0
    %138 = vmatpush1.msra.mxu0 %v33
    %139 = vmatprep.subr.mxu0 0.0
    %140 = vmatpush1.msra.mxu0 %v34
    %141 = vmatprep.subr.mxu0 0.0
    %142 = vmatpush1.msra.mxu0 %v35
    %143 = vmatprep.subr.mxu0 0.0
    %144 = vmatpush1.msra.mxu0 %v36
    %145 = vmatprep.subr.mxu0 0.0
    %146 = vmatpush1.msra.mxu0 %v37
    %147 = vmatprep.subr.mxu0 0.0
    %148 = vmatpush1.msra.mxu0 %v38
    %149 = vmatprep.subr.mxu0 0.0
    %150 = vmatpush1.msra.mxu0 %v39
    %151 = vmatprep.subr.mxu0 0.0
    %152 = vmatpush1.msra.mxu0 0.0
    %153 = vmatprep.subr.mxu0 0.0
    %154 = vmatpush1.msra.mxu0 0.0
    %155 = vmatprep.subr.mxu0 0.0
    %156 = vmatpush1.msra.mxu0 0.0
    %157 = vmatprep.subr.mxu0 0.0
    %158 = vmatpush1.msra.mxu0 0.0
    %159 = vmatprep.subr.mxu0 0.0
    %160 = vmatpush1.msra.mxu0 0.0
    %161 = vmatprep.subr.mxu0 0.0
    %162 = vmatpush1.msra.mxu0 0.0
    %163 = vmatprep.subr.mxu0 0.0
    %164 = vmatpush1.msra.mxu0 0.0
    %165 = vmatprep.subr.mxu0 0.0
    %166 = vmatpush1.msra.mxu0 0.0
    %167 = vmatprep.subr.mxu0 0.0
    %168 = vmatpush1.msra.mxu0 0.0
    %169 = vmatprep.subr.mxu0 0.0
    %170 = vmatpush1.msra.mxu0 0.0
    %171 = vmatprep.subr.mxu0 0.0
    %172 = vmatpush1.msra.mxu0 0.0
    %173 = vmatprep.subr.mxu0 0.0
    %174 = vmatpush1.msra.mxu0 0.0
    %175 = vmatprep.subr.mxu0 0.0
    %176 = vmatpush1.msra.mxu0 0.0
    %177 = vmatprep.subr.mxu0 0.0
    %178 = vmatpush1.msra.mxu0 0.0
    %179 = vmatprep.subr.mxu0 0.0
    %180 = vmatpush1.msra.mxu0 0.0
    %181 = vmatprep.subr.mxu0 0.0
    %182 = vmatpush1.msra.mxu0 0.0
    %183 = vmatprep.subr.mxu0 0.0
    %184 = vmatpush1.msra.mxu0 0.0
    %185 = vmatprep.subr.mxu0 0.0
    %186 = vmatpush1.msra.mxu0 0.0
    %187 = vmatprep.subr.mxu0 0.0
    %188 = vmatpush1.msra.mxu0 0.0
    %189 = vmatprep.subr.mxu0 0.0
    %190 = vmatpush1.msra.mxu0 0.0
    %191 = vmatprep.mubr.f32.mxu0 0.0
    %192 = vmatmul.mubr.f32.gmra.mrb[0].mxu0 %v125
    %v193 = vpop.f32.mrb[0].mxu0
    %v194 = vadd.f32 %v120, %v193
    %v195 = vpop.f32.mrb[0].mxu0
    %196 = vdwg.mxu0
    %v197 = vld [vmem:[%s4] sm:$0x1]
    %v199 = vlaneseq
    %v200 = vshrl.u32 %v199, 7
    %v201 = vsub.s32 0, %v200
    %v202 = vrot.slane %v197, %v201
    %v204 = vadd.f32 %v194, %v202
    %v205 = vmax.f32 %v204, 0.0
    %v206 = vld [vmem:[%s5] sm:$0xff]
    %v207 = vld [vmem:[%s5 + $0x8] sm:$0xff]
    %v208 = vld [vmem:[%s5 + $0x10] sm:$0xff]
    %v209 = vld [vmem:[%s5 + $0x18] sm:$0xff]
    %v210 = vld [vmem:[%s6] sm:$0x1]
    %v212 = vlaneseq
    %v213 = vshrl.u32 %v212, 7
    %v214 = vsub.s32 0, %v213
    %v215 = vrot.slane %v210, %v214
    %vm217 = vcmask 261120
    %v219 = vsel %vm217, %v205, 0
    %221 = vmatprep.subr.mxu0 0.0
    %222 = vmatpush1.msra.mxu0 %v206
    %223 = vmatprep.subr.mxu0 0.0
    %224 = vmatpush1.msra.mxu0 %v207
    %225 = vmatprep.subr.mxu0 0.0
    %226 = vmatpush1.msra.mxu0 %v208
    %227 = vmatprep.subr.mxu0 0.0
    %228 = vmatpush1.msra.mxu0 %v209
    %229 = vmatprep.subr.mxu0 0.0
    %230 = vmatpush1.msra.mxu0 0.0
    %231 = vmatprep.subr.mxu0 0.0
    %232 = vmatpush1.msra.mxu0 0.0
    %233 = vmatprep.subr.mxu0 0.0
    %234 = vmatpush1.msra.mxu0 0.0
    %235 = vmatprep.subr.mxu0 0.0
    %236 = vmatpush1.msra.mxu0 0.0
    %237 = vmatprep.subr.mxu0 0.0
    %238 = vmatpush1.msra.mxu0 0.0
    %239 = vmatprep.subr.mxu0 0.0
    %240 = vmatpush1.msra.mxu0 0.0
    %241 = vmatprep.subr.mxu0 0.0
    %242 = vmatpush1.msra.mxu0 0.0
    %243 = vmatprep.subr.mxu0 0.0
    %244 = vmatpush1.msra.mxu0 0.0
    %245 = vmatprep.subr.mxu0 0.0
    %246 = vmatpush1.msra.mxu0 0.0
    %247 = vmatprep.subr.mxu0 0.0
    %248 = vmatpush1.msra.mxu0 0.0
    %249 = vmatprep.subr.mxu0 0.0
    %250 = vmatpush1.msra.mxu0 0.0
    %251 = vmatprep.subr.mxu0 0.0
    %252 = vmatpush1.msra.mxu0 0.0
    %253 = vmatprep.subr.mxu0 0.0
    %254 = vmatpush1.msra.mxu0 0.0
    %255 = vmatprep.subr.mxu0 0.0
    %256 = vmatpush1.msra.mxu0 0.0
    %257 = vmatprep.subr.mxu0 0.0
    %258 = vmatpush1.msra.mxu0 0.0
    %259 = vmatprep.subr.mxu0 0.0
    %260 = vmatpush1.msra.mxu0 0.0
    %261 = vmatprep.subr.mxu0 0.0
    %262 = vmatpush1.msra.mxu0 0.0
    %263 = vmatprep.subr.mxu0 0.0
    %264 = vmatpush1.msra.mxu0 0.0
    %265 = vmatprep.subr.mxu0 0.0
    %266 = vmatpush1.msra.mxu0 0.0
    %267 = vmatprep.subr.mxu0 0.0
    %268 = vmatpush1.msra.mxu0 0.0
    %269 = vmatprep.subr.mxu0 0.0
    %270 = vmatpush1.msra.mxu0 0.0
    %271 = vmatprep.subr.mxu0 0.0
    %272 = vmatpush1.msra.mxu0 0.0
    %273 = vmatprep.subr.mxu0 0.0
    %274 = vmatpush1.msra.mxu0 0.0
    %275 = vmatprep.subr.mxu0 0.0
    %276 = vmatpush1.msra.mxu0 0.0
    %277 = vmatprep.subr.mxu0 0.0
    %278 = vmatpush1.msra.mxu0 0.0
    %279 = vmatprep.subr.mxu0 0.0
    %280 = vmatpush1.msra.mxu0 0.0
    %281 = vmatprep.subr.mxu0 0.0
    %282 = vmatpush1.msra.mxu0 0.0
    %283 = vmatprep.subr.mxu0 0.0
    %284 = vmatpush1.msra.mxu0 0.0
    %285 = vmatprep.mubr.f32.mxu0 0.0
    %286 = vmatmul.mubr.f32.gmra.mrb[0].mxu0 %v219
    %v287 = vpop.f32.mrb[0].mxu0
    %v288 = vadd.f32 %v215, %v287
    %v289 = vpop.f32.mrb[0].mxu0
    %290 = vdwg.mxu0
    %v291 = vxor.u32 %v288, 2147483648
    %v292 = vmul.f32 %v291, 1.442695
    %v293 = vpow.pop %v292
    %v294 = vadd.f32 %v293, 1.0
    %v295 = vrcp.pop %v294
    %v296 = vmul.f32 1.0, %v295
    %vm297 = vcmask 25600
    %298 = vst.msk [vmem:[#allocation2] sm:$0x3] %vm297, %v296
    // Predicated region
    $region30: #{tpu_custom_call.1} parent=1 // pred_check
      _
    $region31: #{tpu_custom_call.1} parent=1 // pred_check_branch
      %300 = sbr.rel (0) target = $region33
    $region32: #{tpu_custom_call.1} parent=1 // pred_region
      %s302 = ssub.s32 32, 32
      %303 = vsyncadd [#allocation3], %s302
      %s305 = sshll.u32 [#allocation2], 4
      %s306 = int_to_ptr.vmem [resolvable:$true] %s305
      %308 = dma.vmem_to_hbm [thread:$0]  %s306, 32, %s7, [#allocation3]
    $region33: #{tpu_custom_call.1} parent=1 // pred_fallthru
      _
    // Predicated region
    $region34: #{tpu_custom_call.1} parent=1 // pred_check
      _
    $region35: #{tpu_custom_call.1} parent=1 // pred_check_branch
      %310 = sbr.rel (0) target = $region37
    $region36: #{tpu_custom_call.1} parent=1 // pred_region
      %311 = dma.done [#allocation3], 32
    $region37: #{tpu_custom_call.1} parent=1 // pred_fallthru
      _
    %312 = vsyncpa [#allocation3], 1

</llo_original>
